<compile_context>
chip_gen: v7x
topology: tpu7x:2x2x1
jax: 0.10.0
libtpu: 0.0.40
codegen_flags: <defaults>
</compile_context>

<pallas_src>
import functools

import jax
import jax.numpy as jnp
from jax import lax
from jax.experimental import pallas as pl
from jax.experimental.pallas import tpu as pltpu


def _round_up(x, m):
    return (x + m - 1) // m * m


def _ffn_kernel(x_ref, g_ref, b_ref, w1_ref, b1_ref, w2_ref, b2_ref, o_ref,
                xn_ref, acc_ref, *, inv_dim, compute_dtype):
    k = pl.program_id(1)

    # ---- k == 0: fused one-pass LayerNorm + accumulator init -----------------
    # Padded feature columns of x are zero (and padded gamma/beta are zero), so
    # sums over the padded width equal sums over the true width; divide by the
    # true dim (inv_dim = 1/dim).  xn's padded columns come out exactly zero.
    @pl.when(k == 0)
    def _():
        x = x_ref[...].astype(jnp.float32)                    # (tm, dim_p)
        s1 = jnp.sum(x, axis=-1, keepdims=True)
        s2 = jnp.sum(x * x, axis=-1, keepdims=True)
        mean = s1 * inv_dim
        var = jnp.maximum(s2 * inv_dim - mean * mean, 0.0)    # clamp: no NaN
        rstd = lax.rsqrt(var + 1e-5)                          # PyTorch LN eps
        scale = rstd * g_ref[...]                             # fold gamma*rsqrt
        shift = b_ref[...] - mean * scale
        xn_ref[...] = (x * scale + shift).astype(xn_ref.dtype)
        acc_ref[...] = jnp.zeros_like(acc_ref)

    # ---- Linear(dim -> hidden tile), bf16 MXU, f32 accumulation ---------------
    h = jnp.dot(xn_ref[...], w1_ref[...],
                preferred_element_type=jnp.float32) + b1_ref[...]

    # ---- GELU (exact / erf form, PyTorch nn.GELU default) ---------------------
    h = 0.5 * h * (1.0 + lax.erf(h * 0.7071067811865476))

    # Dropout(p=0.0) is the identity -> no-op.

    # ---- Linear(hidden tile -> dim), accumulate over the hidden axis ----------
    acc_ref[...] += jnp.dot(h.astype(compute_dtype), w2_ref[...],
                            preferred_element_type=jnp.float32)

    # ---- k == last: add b2 and write the lane-dense output tile ---------------
    @pl.when(k == pl.num_programs(1) - 1)
    def _():
        o_ref[...] = (acc_ref[...] + b2_ref[...]).astype(o_ref.dtype)


def feed_forward_pallas(x, gamma, beta, w1, b1, w2, b2, *,
                        compute_dtype=jnp.bfloat16,
                        block_rows=512, block_hidden=512):
    """x: (B, S, dim). w1: (dim, hidden), w2: (hidden, dim). Returns (B, S, dim)."""
    B, S, dim = x.shape
    hidden = w1.shape[1]
    assert w1.shape == (dim, hidden) and w2.shape == (hidden, dim)

    M = B * S
    f32 = jnp.float32
    # 256-aligned matmul dims (v6e/v7x MXU is 256x256; 128 would leave it half idle).
    dim_p = _round_up(dim, 256)
    hid_p = _round_up(hidden, 256)
    block_hidden = _round_up(block_hidden, 256)
    th = min(block_hidden, hid_p)
    hid_p = _round_up(hid_p, th)          # hidden grid divides evenly
    kt = hid_p // th

    # Row tile: big tiles amortize the ~0.35us/step overhead, but keep >= 4 row
    # steps (>= 2 per TensorCore on v7x) when there is enough work so the
    # x/out DMA double-buffering and megacore split actually overlap.
    tm = min(block_rows, M)
    if M >= 4 * 256 and -(-M // tm) < 4:
        tm = max(256, _round_up(-(-M // 4), 8))
    Mp = _round_up(M, tm)

    x2 = x.reshape(M, dim)
    if (Mp != M) or (dim_p != dim):
        x2 = jnp.pad(x2, ((0, Mp - M), (0, dim_p - dim)))
    # Zero-padded params: padded gamma/beta/bias entries and padded weight
    # rows/cols are 0, so the padded lanes carry exact zeros end-to-end.
    g2 = jnp.pad(gamma.astype(f32), (0, dim_p - dim)).reshape(1, dim_p)
    be2 = jnp.pad(beta.astype(f32), (0, dim_p - dim)).reshape(1, dim_p)
    w1p = jnp.pad(w1, ((0, dim_p - dim), (0, hid_p - hidden))).astype(compute_dtype)
    b1p = jnp.pad(b1.astype(f32), (0, hid_p - hidden)).reshape(1, hid_p)
    w2p = jnp.pad(w2, ((0, hid_p - hidden), (0, dim_p - dim))).astype(compute_dtype)
    b2p = jnp.pad(b2.astype(f32), (0, dim_p - dim)).reshape(1, dim_p)

    grid = (Mp // tm, kt)

    # VMEM accounting: double-buffered x/out tiles + streamed weight tiles +
    # scratches + f32 h intermediate + headroom; clamped generation-aware so we
    # never request more than the chip actually has (v7x: 64 MiB per TC).
    x_sz = jnp.dtype(x.dtype).itemsize
    c_sz = jnp.dtype(compute_dtype).itemsize
    vmem_needed = (
        2 * tm * dim_p * x_sz                   # x tile   (2x buffered)
        + 2 * tm * dim_p * x_sz                 # out tile (2x buffered)
        + 2 * (dim_p * th + th * dim_p) * c_sz  # w1/w2 streamed tiles (2x)
        + tm * dim_p * c_sz                     # xn scratch
        + tm * dim_p * 4                        # f32 accumulator scratch
        + tm * th * 4                           # f32 h intermediate
        + 2 * (th + 3 * dim_p) * 4              # biases / gamma / beta
        + (4 << 20)                             # headroom for Mosaic scratch
    )
    try:
        vmem_cap = int(pltpu.get_tpu_info().vmem_capacity_bytes)
    except Exception:
        vmem_cap = 64 << 20                     # conservative (v7x per-TC)
    vmem_limit = int(min(max(vmem_needed, 32 << 20), int(0.85 * vmem_cap)))

    # Advisory cost estimate so XLA can schedule neighbors around the call.
    cost = pl.CostEstimate(
        flops=int(2 * 2 * Mp * dim_p * hid_p),
        transcendentals=int(Mp * hid_p),
        bytes_accessed=int(2 * Mp * dim_p * x_sz
                           + (w1p.size + w2p.size) * c_sz),
    )

    kernel = functools.partial(_ffn_kernel, inv_dim=1.0 / dim,
                               compute_dtype=compute_dtype)

    out2 = pl.pallas_call(
        kernel,
        out_shape=jax.ShapeDtypeStruct((Mp, dim_p), x.dtype),
        grid_spec=pltpu.PrefetchScalarGridSpec(
            num_scalar_prefetch=0,
            grid=grid,
            in_specs=[
                pl.BlockSpec((tm, dim_p), lambda i, k: (i, 0)),    # x tile
                pl.BlockSpec((1, dim_p), lambda i, k: (0, 0)),     # gamma
                pl.BlockSpec((1, dim_p), lambda i, k: (0, 0)),     # beta
                pl.BlockSpec((dim_p, th), lambda i, k: (0, k)),    # w1 (streamed)
                pl.BlockSpec((1, th), lambda i, k: (0, k)),        # b1 (streamed)
                pl.BlockSpec((th, dim_p), lambda i, k: (k, 0)),    # w2 (streamed)
                pl.BlockSpec((1, dim_p), lambda i, k: (0, 0)),     # b2
            ],
            out_specs=pl.BlockSpec((tm, dim_p), lambda i, k: (i, 0)),
            scratch_shapes=[
                pltpu.VMEM((tm, dim_p), compute_dtype),            # xn (LN result)
                pltpu.VMEM((tm, dim_p), jnp.float32),              # f32 accumulator
            ],
        ),
        compiler_params=pltpu.CompilerParams(
            dimension_semantics=("parallel", "arbitrary"),
            vmem_limit_bytes=vmem_limit,
        ),
        cost_estimate=cost,
    )(x2, g2, be2, w1p, b1p, w2p, b2p)

    out2 = out2[:M, :dim]
    return out2.reshape(B, S, dim)


def _reference(x, gamma, beta, w1, b1, w2, b2):
    xf = x.astype(jnp.float32)
    mean = jnp.mean(xf, axis=-1, keepdims=True)
    var = jnp.mean(jnp.square(xf - mean), axis=-1, keepdims=True)
    xn = (xf - mean) * lax.rsqrt(var + 1e-5) * gamma + beta
    h = xn @ w1 + b1
    h = 0.5 * h * (1.0 + lax.erf(h / jnp.sqrt(2.0)))
    return (h @ w2 + b2).astype(x.dtype)


if __name__ == "__main__":
    # Small shapes consistent with the module: (batch, seq, dim), hidden = 2*dim.
    B, S, dim, hidden = 2, 8, 32, 64

    key = jax.random.PRNGKey(0)
    kx, kg, kb, kw1, kb1, kw2, kb2 = jax.random.split(key, 7)

    x = jax.random.normal(kx, (B, S, dim), dtype=jnp.float32)

    # Non-trivial LayerNorm affine + Linear params (weights in (in, out) layout).
    gamma = 1.0 + 0.1 * jax.random.normal(kg, (dim,), dtype=jnp.float32)
    beta = 0.1 * jax.random.normal(kb, (dim,), dtype=jnp.float32)
    w1 = jax.random.normal(kw1, (dim, hidden), dtype=jnp.float32) * 0.05
    b1 = jax.random.normal(kb1, (hidden,), dtype=jnp.float32) * 0.05
    w2 = jax.random.normal(kw2, (hidden, dim), dtype=jnp.float32) * 0.05
    b2 = jax.random.normal(kb2, (dim,), dtype=jnp.float32) * 0.05

    out = feed_forward_pallas(x, gamma, beta, w1, b1, w2, b2)
    out = jax.block_until_ready(out)

    ref = _reference(x, gamma, beta, w1, b1, w2, b2)
    assert out.shape == (B, S, dim)
    # bf16 MXU inputs with f32 accumulation -> loosened tolerance vs f32 reference.
    assert jnp.allclose(out, ref, atol=2e-2, rtol=2e-2), "mismatch vs reference"

    print("KERNEL_OK")
</pallas_src>

<mosaic_0001>
module attributes {stable_mosaic.version = 11 : i64} {
  func.func @_ffn_kernel(%arg0: i32, %arg1: i32, %arg2: memref<16x256xf32, #tpu.memory_space<vmem>>, %arg3: memref<1x256xf32, #tpu.memory_space<vmem>>, %arg4: memref<1x256xf32, #tpu.memory_space<vmem>>, %arg5: memref<256x256xbf16, #tpu.memory_space<vmem>>, %arg6: memref<1x256xf32, #tpu.memory_space<vmem>>, %arg7: memref<256x256xbf16, #tpu.memory_space<vmem>>, %arg8: memref<1x256xf32, #tpu.memory_space<vmem>>, %arg9: memref<16x256xf32, #tpu.memory_space<vmem>>, %arg10: memref<16x256xbf16, #tpu.memory_space<vmem>>, %arg11: memref<16x256xf32, #tpu.memory_space<vmem>>) attributes {dimension_semantics = [#tpu.dimension_semantics<parallel>, #tpu.dimension_semantics<arbitrary>], iteration_bounds = array<i64: 1, 1>, scalar_prefetch = 0 : i64, scratch_operands = 2 : i64, tpu.core_type = #tpu.core_type<tc>, window_params = [{transform_indices = @transform_0, window_bounds = array<i64: 16, 256>}, {pipeline_mode = #tpu.pipeline_mode<synchronous>, transform_indices = @transform_1, window_bounds = array<i64: 1, 256>}, {pipeline_mode = #tpu.pipeline_mode<synchronous>, transform_indices = @transform_2, window_bounds = array<i64: 1, 256>}, {transform_indices = @transform_3, window_bounds = array<i64: 256, 256>}, {transform_indices = @transform_4, window_bounds = array<i64: 1, 256>}, {transform_indices = @transform_5, window_bounds = array<i64: 256, 256>}, {pipeline_mode = #tpu.pipeline_mode<synchronous>, transform_indices = @transform_6, window_bounds = array<i64: 1, 256>}, {transform_indices = @transform_7, window_bounds = array<i64: 16, 256>}]} {
    %c0_i32 = arith.constant 0 : i32
    %0 = arith.cmpi eq, %arg1, %c0_i32 : i32
    %1 = arith.extui %0 : i1 to i32
    %c0_i32_0 = arith.constant 0 : i32
    %2 = arith.cmpi ne, %1, %c0_i32_0 : i32
    scf.if %2 {
      %c0_18 = arith.constant 0 : index
      %c0_19 = arith.constant 0 : index
      %26 = vector.load %arg2[%c0_18, %c0_19] : memref<16x256xf32, #tpu.memory_space<vmem>>, vector<16x256xf32>
      %cst_20 = arith.constant dense<0.000000e+00> : vector<16xf32>
      %27 = vector.multi_reduction <add>, %26, %cst_20 [1] : vector<16x256xf32> to vector<16xf32>
      %28 = vector.shape_cast %27 : vector<16xf32> to vector<16x1xf32>
      %29 = arith.mulf %26, %26 : vector<16x256xf32>
      %cst_21 = arith.constant dense<0.000000e+00> : vector<16xf32>
      %30 = vector.multi_reduction <add>, %29, %cst_21 [1] : vector<16x256xf32> to vector<16xf32>
      %31 = vector.shape_cast %30 : vector<16xf32> to vector<16x1xf32>
      %cst_22 = arith.constant 3.125000e-02 : f32
      %32 = vector.broadcast %cst_22 : f32 to vector<16x1xf32>
      %33 = arith.mulf %28, %32 : vector<16x1xf32>
      %cst_23 = arith.constant 3.125000e-02 : f32
      %34 = vector.broadcast %cst_23 : f32 to vector<16x1xf32>
      %35 = arith.mulf %31, %34 : vector<16x1xf32>
      %36 = arith.mulf %33, %33 : vector<16x1xf32>
      %37 = arith.subf %35, %36 : vector<16x1xf32>
      %cst_24 = arith.constant 0.000000e+00 : f32
      %38 = vector.broadcast %cst_24 : f32 to vector<16x1xf32>
      %39 = arith.maximumf %37, %38 : vector<16x1xf32>
      %cst_25 = arith.constant 9.99999974E-6 : f32
      %40 = vector.broadcast %cst_25 : f32 to vector<16x1xf32>
      %41 = arith.addf %39, %40 : vector<16x1xf32>
      %42 = math.rsqrt %41 : vector<16x1xf32>
      %c0_26 = arith.constant 0 : index
      %c0_27 = arith.constant 0 : index
      %43 = vector.load %arg3[%c0_26, %c0_27] : memref<1x256xf32, #tpu.memory_space<vmem>>, vector<1x256xf32>
      %44 = vector.broadcast %42 : vector<16x1xf32> to vector<16x256xf32>
      %45 = vector.broadcast %43 : vector<1x256xf32> to vector<16x256xf32>
      %46 = arith.mulf %44, %45 : vector<16x256xf32>
      %c0_28 = arith.constant 0 : index
      %c0_29 = arith.constant 0 : index
      %47 = vector.load %arg4[%c0_28, %c0_29] : memref<1x256xf32, #tpu.memory_space<vmem>>, vector<1x256xf32>
      %48 = vector.broadcast %33 : vector<16x1xf32> to vector<16x256xf32>
      %49 = arith.mulf %48, %46 : vector<16x256xf32>
      %50 = vector.broadcast %47 : vector<1x256xf32> to vector<16x256xf32>
      %51 = arith.subf %50, %49 : vector<16x256xf32>
      %52 = arith.mulf %26, %46 : vector<16x256xf32>
      %53 = arith.addf %52, %51 : vector<16x256xf32>
      %54 = arith.truncf %53 : vector<16x256xf32> to vector<16x256xbf16>
      %c0_30 = arith.constant 0 : index
      %c0_31 = arith.constant 0 : index
      %55 = vector.load %arg10[%c0_30, %c0_31] : memref<16x256xbf16, #tpu.memory_space<vmem>>, vector<16x256xbf16>
      tpu.vector_store %arg10[%c0_30, %c0_31], %54 {strides = array<i32>} : memref<16x256xbf16, #tpu.memory_space<vmem>>, vector<16x256xbf16>,
      %cst_32 = arith.constant 0.000000e+00 : f32
      %56 = vector.broadcast %cst_32 : f32 to vector<16x256xf32>
      %c0_33 = arith.constant 0 : index
      %c0_34 = arith.constant 0 : index
      %57 = vector.load %arg11[%c0_33, %c0_34] : memref<16x256xf32, #tpu.memory_space<vmem>>, vector<16x256xf32>
      tpu.vector_store %arg11[%c0_33, %c0_34], %56 {strides = array<i32>} : memref<16x256xf32, #tpu.memory_space<vmem>>, vector<16x256xf32>,
    } else {
    }
    %c0 = arith.constant 0 : index
    %c0_1 = arith.constant 0 : index
    %3 = vector.load %arg10[%c0, %c0_1] : memref<16x256xbf16, #tpu.memory_space<vmem>>, vector<16x256xbf16>
    %c0_2 = arith.constant 0 : index
    %c0_3 = arith.constant 0 : index
    %4 = vector.load %arg5[%c0_2, %c0_3] : memref<256x256xbf16, #tpu.memory_space<vmem>>, vector<256x256xbf16>
    %cst = arith.constant dense<0.000000e+00> : vector<16x256xf32>
    %5 = tpu.matmul %3, %4, %cst {dimension_numbers = #tpu.dot_dimension_numbers<[1], [0], [0], [1], [0, 0, 1, 1], [], []>} : vector<16x256xbf16>, vector<256x256xbf16>, vector<16x256xf32> -> vector<16x256xf32>
    %c0_4 = arith.constant 0 : index
    %c0_5 = arith.constant 0 : index
    %6 = vector.load %arg6[%c0_4, %c0_5] : memref<1x256xf32, #tpu.memory_space<vmem>>, vector<1x256xf32>
    %7 = vector.broadcast %6 : vector<1x256xf32> to vector<16x256xf32>
    %8 = arith.addf %5, %7 : vector<16x256xf32>
    %cst_6 = arith.constant 5.000000e-01 : f32
    %9 = vector.broadcast %cst_6 : f32 to vector<16x256xf32>
    %10 = arith.mulf %9, %8 : vector<16x256xf32>
    %cst_7 = arith.constant 0.707106769 : f32
    %11 = vector.broadcast %cst_7 : f32 to vector<16x256xf32>
    %12 = arith.mulf %8, %11 : vector<16x256xf32>
    %13 = math.erf %12 : vector<16x256xf32>
    %cst_8 = arith.constant 1.000000e+00 : f32
    %14 = vector.broadcast %cst_8 : f32 to vector<16x256xf32>
    %15 = arith.addf %14, %13 : vector<16x256xf32>
    %16 = arith.mulf %10, %15 : vector<16x256xf32>
    %c0_9 = arith.constant 0 : index
    %c0_10 = arith.constant 0 : index
    %17 = vector.load %arg11[%c0_9, %c0_10] : memref<16x256xf32, #tpu.memory_space<vmem>>, vector<16x256xf32>
    %18 = arith.truncf %16 : vector<16x256xf32> to vector<16x256xbf16>
    %c0_11 = arith.constant 0 : index
    %c0_12 = arith.constant 0 : index
    %19 = vector.load %arg7[%c0_11, %c0_12] : memref<256x256xbf16, #tpu.memory_space<vmem>>, vector<256x256xbf16>
    %cst_13 = arith.constant dense<0.000000e+00> : vector<16x256xf32>
    %20 = tpu.matmul %18, %19, %cst_13 {dimension_numbers = #tpu.dot_dimension_numbers<[1], [0], [0], [1], [0, 0, 1, 1], [], []>} : vector<16x256xbf16>, vector<256x256xbf16>, vector<16x256xf32> -> vector<16x256xf32>
    %21 = arith.addf %17, %20 : vector<16x256xf32>
    %c0_14 = arith.constant 0 : index
    %c0_15 = arith.constant 0 : index
    %22 = vector.load %arg11[%c0_14, %c0_15] : memref<16x256xf32, #tpu.memory_space<vmem>>, vector<16x256xf32>
    tpu.vector_store %arg11[%c0_14, %c0_15], %21 {strides = array<i32>} : memref<16x256xf32, #tpu.memory_space<vmem>>, vector<16x256xf32>,
    %c0_i32_16 = arith.constant 0 : i32
    %23 = arith.cmpi eq, %arg1, %c0_i32_16 : i32
    %24 = arith.extui %23 : i1 to i32
    %c0_i32_17 = arith.constant 0 : i32
    %25 = arith.cmpi ne, %24, %c0_i32_17 : i32
    scf.if %25 {
      %c0_18 = arith.constant 0 : index
      %c0_19 = arith.constant 0 : index
      %26 = vector.load %arg11[%c0_18, %c0_19] : memref<16x256xf32, #tpu.memory_space<vmem>>, vector<16x256xf32>
      %c0_20 = arith.constant 0 : index
      %c0_21 = arith.constant 0 : index
      %27 = vector.load %arg8[%c0_20, %c0_21] : memref<1x256xf32, #tpu.memory_space<vmem>>, vector<1x256xf32>
      %28 = vector.broadcast %27 : vector<1x256xf32> to vector<16x256xf32>
      %29 = arith.addf %26, %28 : vector<16x256xf32>
      %c0_22 = arith.constant 0 : index
      %c0_23 = arith.constant 0 : index
      %30 = vector.load %arg9[%c0_22, %c0_23] : memref<16x256xf32, #tpu.memory_space<vmem>>, vector<16x256xf32>
      tpu.vector_store %arg9[%c0_22, %c0_23], %29 {strides = array<i32>} : memref<16x256xf32, #tpu.memory_space<vmem>>, vector<16x256xf32>,
    } else {
    }
    return
  }
  func.func @transform_0(%arg0: i32, %arg1: i32) -> (i32, i32) {
    %c0_i32 = arith.constant 0 : i32
    %c0_i32_0 = arith.constant 0 : i32
    return %arg0, %c0_i32 : i32, i32
  }
  func.func @transform_1(%arg0: i32, %arg1: i32) -> (i32, i32) {
    %c0_i32 = arith.constant 0 : i32
    %c0_i32_0 = arith.constant 0 : i32
    %c0_i32_1 = arith.constant 0 : i32
    return %c0_i32, %c0_i32_0 : i32, i32
  }
  func.func @transform_2(%arg0: i32, %arg1: i32) -> (i32, i32) {
    %c0_i32 = arith.constant 0 : i32
    %c0_i32_0 = arith.constant 0 : i32
    %c0_i32_1 = arith.constant 0 : i32
    return %c0_i32, %c0_i32_0 : i32, i32
  }
  func.func @transform_3(%arg0: i32, %arg1: i32) -> (i32, i32) {
    %c0_i32 = arith.constant 0 : i32
    %c0_i32_0 = arith.constant 0 : i32
    return %c0_i32, %arg1 : i32, i32
  }
  func.func @transform_4(%arg0: i32, %arg1: i32) -> (i32, i32) {
    %c0_i32 = arith.constant 0 : i32
    %c0_i32_0 = arith.constant 0 : i32
    return %c0_i32, %arg1 : i32, i32
  }
  func.func @transform_5(%arg0: i32, %arg1: i32) -> (i32, i32) {
    %c0_i32 = arith.constant 0 : i32
    %c0_i32_0 = arith.constant 0 : i32
    return %arg1, %c0_i32 : i32, i32
  }
  func.func @transform_6(%arg0: i32, %arg1: i32) -> (i32, i32) {
    %c0_i32 = arith.constant 0 : i32
    %c0_i32_0 = arith.constant 0 : i32
    %c0_i32_1 = arith.constant 0 : i32
    return %c0_i32, %c0_i32_0 : i32, i32
  }
  func.func @transform_7(%arg0: i32, %arg1: i32) -> (i32, i32) {
    %c0_i32 = arith.constant 0 : i32
    %c0_i32_0 = arith.constant 0 : i32
    return %arg0, %c0_i32 : i32, i32
  }
}

</mosaic_0001>

<llo_original>
// kernel: tpu_custom_call.1
$region0: #{tpu_custom_call.1}
  #allocation0 [shape = 'u32[]', space=smem, size = 0x4, offset = 0x4, fixed_abs, tag = 'smem constant byte address 0x4 - core index']
  #allocation1 [shape = 'u32[144,128]{1,0:T(1,128)}', space=vmem, size = 0x12000, scoped, tag = 'internal scratch']
  #allocation2 [shape = 'bf16[16,256]{1,0:T(16,128)(2,1)}', space=vmem, size = 0x2000, scoped, tag = 'scratch operand']
  #allocation3 [shape = 'f32[16,256]{1,0:T(8,128)}', space=vmem, size = 0x4000, scoped, tag = 'scratch operand']
  %s0 = inlined_call_operand.hbm [shape: f32[16,256], index: 0, kind: input, shape index: {}]
  %s1 = inlined_call_operand.vmem [shape: f32[1,256], index: 1, kind: input, shape index: {}]
  %s2 = inlined_call_operand.vmem [shape: f32[1,256], index: 2, kind: input, shape index: {}]
  %s3 = inlined_call_operand.hbm [shape: bf16[256,256], index: 3, kind: input, shape index: {}]
  %s4 = inlined_call_operand.vmem [shape: f32[1,256], index: 4, kind: input, shape index: {}]
  %s5 = inlined_call_operand.hbm [shape: bf16[256,256], index: 5, kind: input, shape index: {}]
  %s6 = inlined_call_operand.vmem [shape: f32[1,256], index: 6, kind: input, shape index: {}]
  %s7 = inlined_call_operand.hbm [shape: f32[16,256], index: 7, kind: output, shape index: {}]
  %s8 = sld [smem:[#allocation0]]
  $region58: #{tpu_custom_call.1} parent=0
    _
  %s10 = ssub.s32 1, %s8
  %s11 = scalar_select 0, %s10, %s8
  $region1: #{tpu_custom_call.1} parent=0
    #allocation4 [shape = 'u8[16384]{0}', space=vmem, size = 0x4000, scoped, tag = 'input window, operand 0, single buffered']
    #allocation5 [shape = 's32[1]{0}', space=sflag, size = 0x4, scoped, tag = 'scoped memory for tpu_custom_call.1']
    #allocation6 [shape = 's32[1]{0}', space=sflag, size = 0x4, scoped, tag = 'scoped memory for tpu_custom_call.1']
    #allocation7 [shape = 'u8[131072]{0}', space=vmem, size = 0x20000, scoped, tag = 'input window, operand 3, single buffered']
    #allocation8 [shape = 's32[1]{0}', space=sflag, size = 0x4, scoped, tag = 'scoped memory for tpu_custom_call.1']
    #allocation9 [shape = 'u8[131072]{0}', space=vmem, size = 0x20000, scoped, tag = 'input window, operand 5, single buffered']
    #allocation10 [shape = 'u8[16384]{0}', space=vmem, size = 0x4000, scoped, tag = 'output window, operand 0, single buffered']
    %12 = vsyncpa [#allocation5], 0
    %13 = vsyncpa [#allocation8], 0
    %14 = vsyncpa [#allocation6], 0
    // Predicated region
    $region2: #{tpu_custom_call.1} parent=1 // pred_check
      _
    $region3: #{tpu_custom_call.1} parent=1 // pred_check_branch
      %16 = sbr.rel (0) target = $region5
    $region4: #{tpu_custom_call.1} parent=1 // pred_region
      %s18 = ssub.s32 512, 512
      %19 = vsyncadd [#allocation5], %s18
      %s20 = sshll.u32 [#allocation4], 4
      %s21 = int_to_ptr.vmem [resolvable:$true] %s20
      %26 = dma.hbm_to_vmem [thread:$0]  %s0, 512, %s21, [#allocation5], 256, 256, 16
    $region5: #{tpu_custom_call.1} parent=1 // pred_fallthru
      _
    // Predicated region
    $region6: #{tpu_custom_call.1} parent=1 // pred_check
      _
    $region7: #{tpu_custom_call.1} parent=1 // pred_check_branch
      %28 = sbr.rel (0) target = $region9
    $region8: #{tpu_custom_call.1} parent=1 // pred_region
      _
    $region9: #{tpu_custom_call.1} parent=1 // pred_fallthru
      _
    // Predicated region
    $region10: #{tpu_custom_call.1} parent=1 // pred_check
      _
    $region11: #{tpu_custom_call.1} parent=1 // pred_check_branch
      %30 = sbr.rel (0) target = $region13
    $region12: #{tpu_custom_call.1} parent=1 // pred_region
      _
    $region13: #{tpu_custom_call.1} parent=1 // pred_fallthru
      _
    // Predicated region
    $region14: #{tpu_custom_call.1} parent=1 // pred_check
      _
    $region15: #{tpu_custom_call.1} parent=1 // pred_check_branch
      %32 = sbr.rel (0) target = $region17
    $region16: #{tpu_custom_call.1} parent=1 // pred_region
      %s34 = ssub.s32 4096, 4096
      %35 = vsyncadd [#allocation8], %s34
      %s36 = sshll.u32 [#allocation7], 4
      %s37 = int_to_ptr.vmem [resolvable:$true] %s36
      %42 = dma.hbm_to_vmem [thread:$0]  %s3, 4096, %s37, [#allocation8], 128, 128, 8
    $region17: #{tpu_custom_call.1} parent=1 // pred_fallthru
      _
    // Predicated region
    $region18: #{tpu_custom_call.1} parent=1 // pred_check
      _
    $region19: #{tpu_custom_call.1} parent=1 // pred_check_branch
      %44 = sbr.rel (0) target = $region21
    $region20: #{tpu_custom_call.1} parent=1 // pred_region
      _
    $region21: #{tpu_custom_call.1} parent=1 // pred_fallthru
      _
    // Predicated region
    $region22: #{tpu_custom_call.1} parent=1 // pred_check
      _
    $region23: #{tpu_custom_call.1} parent=1 // pred_check_branch
      %46 = sbr.rel (0) target = $region25
    $region24: #{tpu_custom_call.1} parent=1 // pred_region
      %s48 = ssub.s32 4096, 4096
      %49 = vsyncadd [#allocation8], %s48
      %s50 = sshll.u32 [#allocation9], 4
      %s51 = int_to_ptr.vmem [resolvable:$true] %s50
      %56 = dma.hbm_to_vmem [thread:$0]  %s5, 4096, %s51, [#allocation8], 128, 128, 8
    $region25: #{tpu_custom_call.1} parent=1 // pred_fallthru
      _
    // Predicated region
    $region26: #{tpu_custom_call.1} parent=1 // pred_check
      _
    $region27: #{tpu_custom_call.1} parent=1 // pred_check_branch
      %58 = sbr.rel (0) target = $region29
    $region28: #{tpu_custom_call.1} parent=1 // pred_region
      _
    $region29: #{tpu_custom_call.1} parent=1 // pred_fallthru
      _
    // Predicated region
    $region30: #{tpu_custom_call.1} parent=1 // pred_check
      _
    $region31: #{tpu_custom_call.1} parent=1 // pred_check_branch
      %60 = sbr.rel (0) target = $region33
    $region32: #{tpu_custom_call.1} parent=1 // pred_region
      %61 = dma.done [#allocation5], 512
    $region33: #{tpu_custom_call.1} parent=1 // pred_fallthru
      _
    // Predicated region
    $region34: #{tpu_custom_call.1} parent=1 // pred_check
      _
    $region35: #{tpu_custom_call.1} parent=1 // pred_check_branch
      %63 = sbr.rel (0) target = $region37
    $region36: #{tpu_custom_call.1} parent=1 // pred_region
      %64 = dma.done [#allocation8], 4096
    $region37: #{tpu_custom_call.1} parent=1 // pred_fallthru
      _
    // Predicated region
    $region38: #{tpu_custom_call.1} parent=1 // pred_check
      _
    $region39: #{tpu_custom_call.1} parent=1 // pred_check_branch
      %66 = sbr.rel (0) target = $region41
    $region40: #{tpu_custom_call.1} parent=1 // pred_region
      %67 = dma.done [#allocation8], 4096
    $region41: #{tpu_custom_call.1} parent=1 // pred_fallthru
      _
    %p68 = scmp.eq.s32.totalorder 0, 0
    // Predicated region
    $region42: #{tpu_custom_call.1} parent=1 // pred_check
      %p69 = pneg %p68
    $region43: #{tpu_custom_call.1} parent=1 // pred_check_branch
      %71 = sbr.rel (%p69) target = $region45
    $region44: #{tpu_custom_call.1} parent=1 // pred_region
      %v72 = vld [vmem:[#allocation4] sm:$0xff]
      %v73 = vld [vmem:[#allocation4 + $0x8] sm:$0xff]
      %v74 = vld [vmem:[#allocation4 + $0x10] sm:$0xff]
      %v75 = vld [vmem:[#allocation4 + $0x18] sm:$0xff]
      %v76 = vadd.f32 %v72, %v73
      %77 = vadd.xlane.f32.xlu0 %v76
      %v78 = vpop.xlane.xlu0 %77
      %v79 = vadd.f32 %v74, %v75
      %80 = vadd.xlane.f32.xlu0 %v79
      %v81 = vpop.xlane.xlu0 %80
      %v82 = vmul.f32 %v72, %v72
      %v83 = vmul.f32 %v73, %v73
      %v84 = vmul.f32 %v74, %v74
      %v85 = vmul.f32 %v75, %v75
      %v86 = vadd.f32 %v82, %v83
      %87 = vadd.xlane.f32.xlu0 %v86
      %v88 = vpop.xlane.xlu0 %87
      %v89 = vadd.f32 %v84, %v85
      %90 = vadd.xlane.f32.xlu0 %v89
      %v91 = vpop.xlane.xlu0 %90
      %v92 = vmul.f32 %v78, 0.03125
      %v93 = vmul.f32 %v81, 0.03125
      %v94 = vmul.f32 %v88, 0.03125
      %v95 = vmul.f32 %v91, 0.03125
      %v96 = vmul.f32 %v92, %v92
      %v97 = vmul.f32 %v93, %v93
      %v98 = vsub.f32 %v94, %v96
      %v99 = vsub.f32 %v95, %v97
      %v100 = vmax.f32 %v98, 0.0
      %v101 = vmax.f32 %v99, 0.0
      %v102 = vadd.f32 %v100, 1e-05
      %v103 = vadd.f32 %v101, 1e-05
      %v104 = vrsqrt.pop %v102
      %v105 = vrsqrt.pop %v103
      %v106 = vld [vmem:[%s1] sm:$0x3]
      %v108 = vlaneseq
      %v109 = vshrl.u32 %v108, 7
      %v110 = vsub.s32 0, %v109
      %v111 = vrot.slane %v106, %v110
      %v112 = vlaneseq
      %v113 = vshrl.u32 %v112, 7
      %v114 = vsub.s32 1, %v113
      %v115 = vrot.slane %v106, %v114
      %v118 = vmul.f32 %v104, %v111
      %v119 = vmul.f32 %v104, %v115
      %v120 = vmul.f32 %v105, %v111
      %v121 = vmul.f32 %v105, %v115
      %v122 = vld [vmem:[%s2] sm:$0x3]
      %v123 = vmul.f32 %v92, %v118
      %v124 = vmul.f32 %v92, %v119
      %v125 = vmul.f32 %v93, %v120
      %v126 = vmul.f32 %v93, %v121
      %v128 = vlaneseq
      %v129 = vshrl.u32 %v128, 7
      %v130 = vsub.s32 0, %v129
      %v131 = vrot.slane %v122, %v130
      %v132 = vlaneseq
      %v133 = vshrl.u32 %v132, 7
      %v134 = vsub.s32 1, %v133
      %v135 = vrot.slane %v122, %v134
      %v138 = vsub.f32 %v131, %v123
      %v139 = vsub.f32 %v135, %v124
      %v140 = vsub.f32 %v131, %v125
      %v141 = vsub.f32 %v135, %v126
      %v142 = vmul.f32 %v72, %v118
      %v143 = vmul.f32 %v73, %v119
      %v144 = vmul.f32 %v74, %v120
      %v145 = vmul.f32 %v75, %v121
      %v146 = vadd.f32 %v142, %v138
      %v147 = vadd.f32 %v143, %v139
      %v148 = vadd.f32 %v144, %v140
      %v149 = vadd.f32 %v145, %v141
      %v150 = vpack.c.bf16 %v148, %v146
      %v151 = vpack.c.bf16 %v149, %v147
      %152 = vst [vmem:[#allocation2] sm:$0xff] %v150
      %153 = vst [vmem:[#allocation2 + $0x8] sm:$0xff] %v151
      %154 = vst [vmem:[#allocation3] sm:$0xff] 0.0
      %155 = vst [vmem:[#allocation3 + $0x8] sm:$0xff] 0.0
      %156 = vst [vmem:[#allocation3 + $0x10] sm:$0xff] 0.0
      %157 = vst [vmem:[#allocation3 + $0x18] sm:$0xff] 0.0
    $region45: #{tpu_custom_call.1} parent=1 // pred_fallthru
      _
    %v158 = vld [vmem:[#allocation2] sm:$0xff]
    %v159 = vld [vmem:[#allocation2 + $0x8] sm:$0xff]
    %v160 = vld [vmem:[#allocation7] sm:$0xff]
    %v161 = vld [vmem:[#allocation7 + $0x8] sm:$0xff]
    %v162 = vld [vmem:[#allocation7 + $0x10] sm:$0xff]
    %v163 = vld [vmem:[#allocation7 + $0x18] sm:$0xff]
    %v164 = vld [vmem:[#allocation7 + $0x20] sm:$0xff]
    %v165 = vld [vmem:[#allocation7 + $0x28] sm:$0xff]
    %v166 = vld [vmem:[#allocation7 + $0x30] sm:$0xff]
    %v167 = vld [vmem:[#allocation7 + $0x38] sm:$0xff]
    %v168 = vld [vmem:[#allocation7 + $0x40] sm:$0xff]
    %v169 = vld [vmem:[#allocation7 + $0x48] sm:$0xff]
    %v170 = vld [vmem:[#allocation7 + $0x50] sm:$0xff]
    %v171 = vld [vmem:[#allocation7 + $0x58] sm:$0xff]
    %v172 = vld [vmem:[#allocation7 + $0x60] sm:$0xff]
    %v173 = vld [vmem:[#allocation7 + $0x68] sm:$0xff]
    %v174 = vld [vmem:[#allocation7 + $0x70] sm:$0xff]
    %v175 = vld [vmem:[#allocation7 + $0x78] sm:$0xff]
    %v176 = vld [vmem:[#allocation7 + $0x80] sm:$0xff]
    %v177 = vld [vmem:[#allocation7 + $0x88] sm:$0xff]
    %v178 = vld [vmem:[#allocation7 + $0x90] sm:$0xff]
    %v179 = vld [vmem:[#allocation7 + $0x98] sm:$0xff]
    %v180 = vld [vmem:[#allocation7 + $0xa0] sm:$0xff]
    %v181 = vld [vmem:[#allocation7 + $0xa8] sm:$0xff]
    %v182 = vld [vmem:[#allocation7 + $0xb0] sm:$0xff]
    %v183 = vld [vmem:[#allocation7 + $0xb8] sm:$0xff]
    %v184 = vld [vmem:[#allocation7 + $0xc0] sm:$0xff]
    %v185 = vld [vmem:[#allocation7 + $0xc8] sm:$0xff]
    %v186 = vld [vmem:[#allocation7 + $0xd0] sm:$0xff]
    %v187 = vld [vmem:[#allocation7 + $0xd8] sm:$0xff]
    %v188 = vld [vmem:[#allocation7 + $0xe0] sm:$0xff]
    %v189 = vld [vmem:[#allocation7 + $0xe8] sm:$0xff]
    %v190 = vld [vmem:[#allocation7 + $0xf0] sm:$0xff]
    %v191 = vld [vmem:[#allocation7 + $0xf8] sm:$0xff]
    %v192 = vld [vmem:[%s4] sm:$0x3]
    %v194 = vlaneseq
    %v195 = vshrl.u32 %v194, 7
    %v196 = vsub.s32 0, %v195
    %v197 = vrot.slane %v192, %v196
    %v198 = vlaneseq
    %v199 = vshrl.u32 %v198, 7
    %v200 = vsub.s32 1, %v199
    %v201 = vrot.slane %v192, %v200
    %v236 = vunpack.c.l.b16 %v160
    %v237 = vunpack.c.h.b16 %v160
    %v238 = vunpack.c.l.b16 %v161
    %v239 = vunpack.c.h.b16 %v161
    %v240 = vunpack.c.l.b16 %v162
    %v241 = vunpack.c.h.b16 %v162
    %v242 = vunpack.c.l.b16 %v163
    %v243 = vunpack.c.h.b16 %v163
    %v244 = vunpack.c.l.b16 %v164
    %v245 = vunpack.c.h.b16 %v164
    %v246 = vunpack.c.l.b16 %v165
    %v247 = vunpack.c.h.b16 %v165
    %v248 = vunpack.c.l.b16 %v166
    %v249 = vunpack.c.h.b16 %v166
    %v250 = vunpack.c.l.b16 %v167
    %v251 = vunpack.c.h.b16 %v167
    %v252 = vunpack.c.l.b16 %v168
    %v253 = vunpack.c.h.b16 %v168
    %v254 = vunpack.c.l.b16 %v169
    %v255 = vunpack.c.h.b16 %v169
    %v256 = vunpack.c.l.b16 %v170
    %v257 = vunpack.c.h.b16 %v170
    %v258 = vunpack.c.l.b16 %v171
    %v259 = vunpack.c.h.b16 %v171
    %v260 = vunpack.c.l.b16 %v172
    %v261 = vunpack.c.h.b16 %v172
    %v262 = vunpack.c.l.b16 %v173
    %v263 = vunpack.c.h.b16 %v173
    %v264 = vunpack.c.l.b16 %v174
    %v265 = vunpack.c.h.b16 %v174
    %v266 = vunpack.c.l.b16 %v175
    %v267 = vunpack.c.h.b16 %v175
    %v268 = vunpack.c.l.b16 %v176
    %v269 = vunpack.c.h.b16 %v176
    %v270 = vunpack.c.l.b16 %v177
    %v271 = vunpack.c.h.b16 %v177
    %v272 = vunpack.c.l.b16 %v178
    %v273 = vunpack.c.h.b16 %v178
    %v274 = vunpack.c.l.b16 %v179
    %v275 = vunpack.c.h.b16 %v179
    %v276 = vunpack.c.l.b16 %v180
    %v277 = vunpack.c.h.b16 %v180
    %v278 = vunpack.c.l.b16 %v181
    %v279 = vunpack.c.h.b16 %v181
    %v280 = vunpack.c.l.b16 %v182
    %v281 = vunpack.c.h.b16 %v182
    %v282 = vunpack.c.l.b16 %v183
    %v283 = vunpack.c.h.b16 %v183
    %v284 = vunpack.c.l.b16 %v184
    %v285 = vunpack.c.h.b16 %v184
    %v286 = vunpack.c.l.b16 %v185
    %v287 = vunpack.c.h.b16 %v185
    %v288 = vunpack.c.l.b16 %v186
    %v289 = vunpack.c.h.b16 %v186
    %v290 = vunpack.c.l.b16 %v187
    %v291 = vunpack.c.h.b16 %v187
    %v292 = vunpack.c.l.b16 %v188
    %v293 = vunpack.c.h.b16 %v188
    %v294 = vunpack.c.l.b16 %v189
    %v295 = vunpack.c.h.b16 %v189
    %v296 = vunpack.c.l.b16 %v190
    %v297 = vunpack.c.h.b16 %v190
    %v298 = vunpack.c.l.b16 %v191
    %v299 = vunpack.c.h.b16 %v191
    %v300 = vpack.c.b16 %v238, %v236
    %v301 = vpack.c.b16 %v239, %v237
    %v302 = vpack.c.b16 %v242, %v240
    %v303 = vpack.c.b16 %v243, %v241
    %v304 = vpack.c.b16 %v246, %v244
    %v305 = vpack.c.b16 %v247, %v245
    %v306 = vpack.c.b16 %v250, %v248
    %v307 = vpack.c.b16 %v251, %v249
    %v308 = vpack.c.b16 %v254, %v252
    %v309 = vpack.c.b16 %v255, %v253
    %v310 = vpack.c.b16 %v258, %v256
    %v311 = vpack.c.b16 %v259, %v257
    %v312 = vpack.c.b16 %v262, %v260
    %v313 = vpack.c.b16 %v263, %v261
    %v314 = vpack.c.b16 %v266, %v264
    %v315 = vpack.c.b16 %v267, %v265
    %v316 = vpack.c.b16 %v270, %v268
    %v317 = vpack.c.b16 %v271, %v269
    %v318 = vpack.c.b16 %v274, %v272
    %v319 = vpack.c.b16 %v275, %v273
    %v320 = vpack.c.b16 %v278, %v276
    %v321 = vpack.c.b16 %v279, %v277
    %v322 = vpack.c.b16 %v282, %v280
    %v323 = vpack.c.b16 %v283, %v281
    %v324 = vpack.c.b16 %v286, %v284
    %v325 = vpack.c.b16 %v287, %v285
    %v326 = vpack.c.b16 %v290, %v288
    %v327 = vpack.c.b16 %v291, %v289
    %v328 = vpack.c.b16 %v294, %v292
    %v329 = vpack.c.b16 %v295, %v293
    %v330 = vpack.c.b16 %v298, %v296
    %v331 = vpack.c.b16 %v299, %v297
    %364 = vmatprep.subr.bf16.mxu0 %v301
    %365 = vmatpush1.bf16.msra.mxu0 %v300
    %366 = vmatprep.subr.bf16.mxu0 %v303
    %367 = vmatpush1.bf16.msra.mxu0 %v302
    %368 = vmatprep.subr.bf16.mxu0 %v305
    %369 = vmatpush1.bf16.msra.mxu0 %v304
    %370 = vmatprep.subr.bf16.mxu0 %v307
    %371 = vmatpush1.bf16.msra.mxu0 %v306
    %372 = vmatprep.subr.bf16.mxu0 %v309
    %373 = vmatpush1.bf16.msra.mxu0 %v308
    %374 = vmatprep.subr.bf16.mxu0 %v311
    %375 = vmatpush1.bf16.msra.mxu0 %v310
    %376 = vmatprep.subr.bf16.mxu0 %v313
    %377 = vmatpush1.bf16.msra.mxu0 %v312
    %378 = vmatprep.subr.bf16.mxu0 %v315
    %379 = vmatpush1.bf16.msra.mxu0 %v314
    %380 = vmatprep.subr.bf16.mxu0 %v317
    %381 = vmatpush1.bf16.msra.mxu0 %v316
    %382 = vmatprep.subr.bf16.mxu0 %v319
    %383 = vmatpush1.bf16.msra.mxu0 %v318
    %384 = vmatprep.subr.bf16.mxu0 %v321
    %385 = vmatpush1.bf16.msra.mxu0 %v320
    %386 = vmatprep.subr.bf16.mxu0 %v323
    %387 = vmatpush1.bf16.msra.mxu0 %v322
    %388 = vmatprep.subr.bf16.mxu0 %v325
    %389 = vmatpush1.bf16.msra.mxu0 %v324
    %390 = vmatprep.subr.bf16.mxu0 %v327
    %391 = vmatpush1.bf16.msra.mxu0 %v326
    %392 = vmatprep.subr.bf16.mxu0 %v329
    %393 = vmatpush1.bf16.msra.mxu0 %v328
    %394 = vmatprep.subr.bf16.mxu0 %v331
    %395 = vmatpush1.bf16.msra.mxu0 %v330
    %396 = vmatprep.mubr.bf16.mxu0 %v159
    %397 = vmatmul.mubr.bf16.gmra.mrb[0].mxu0 %v158
    %v398 = vpop.f32.mrb[0].mxu0
    %v399 = vadd.f32 %v197, %v398
    %v400 = vpop.f32.mrb[0].mxu0
    %v401 = vadd.f32 %v201, %v400
    %v402 = vpop.f32.mrb[0].mxu0
    %v403 = vadd.f32 %v197, %v402
    %v404 = vpop.f32.mrb[0].mxu0
    %v405 = vadd.f32 %v201, %v404
    %406 = vdwg.mxu0
    %v407 = vmul.f32 %v399, 0.5
    %v408 = vmul.f32 %v401, 0.5
    %v409 = vmul.f32 %v403, 0.5
    %v410 = vmul.f32 %v405, 0.5
    %v411 = vmul.f32 %v399, 0.70710677
    %v412 = vmul.f32 %v401, 0.70710677
    %v413 = vmul.f32 %v403, 0.70710677
    %v414 = vmul.f32 %v405, 0.70710677
    %v415 = verf.f32.pop %v411
    %v416 = verf.f32.pop %v412
    %v417 = verf.f32.pop %v413
    %v418 = verf.f32.pop %v414
    %v419 = vadd.f32 %v415, 1.0
    %v420 = vadd.f32 %v416, 1.0
    %v421 = vadd.f32 %v417, 1.0
    %v422 = vadd.f32 %v418, 1.0
    %v423 = vmul.f32 %v407, %v419
    %v424 = vmul.f32 %v408, %v420
    %v425 = vmul.f32 %v409, %v421
    %v426 = vmul.f32 %v410, %v422
    %v427 = vld [vmem:[#allocation3] sm:$0xff]
    %v428 = vld [vmem:[#allocation3 + $0x8] sm:$0xff]
    %v429 = vld [vmem:[#allocation3 + $0x10] sm:$0xff]
    %v430 = vld [vmem:[#allocation3 + $0x18] sm:$0xff]
    %v431 = vpack.c.bf16 %v425, %v423
    %v432 = vpack.c.bf16 %v426, %v424
    %v433 = vld [vmem:[#allocation9] sm:$0xff]
    %v434 = vld [vmem:[#allocation9 + $0x8] sm:$0xff]
    %v435 = vld [vmem:[#allocation9 + $0x10] sm:$0xff]
    %v436 = vld [vmem:[#allocation9 + $0x18] sm:$0xff]
    %v437 = vld [vmem:[#allocation9 + $0x20] sm:$0xff]
    %v438 = vld [vmem:[#allocation9 + $0x28] sm:$0xff]
    %v439 = vld [vmem:[#allocation9 + $0x30] sm:$0xff]
    %v440 = vld [vmem:[#allocation9 + $0x38] sm:$0xff]
    %v441 = vld [vmem:[#allocation9 + $0x40] sm:$0xff]
    %v442 = vld [vmem:[#allocation9 + $0x48] sm:$0xff]
    %v443 = vld [vmem:[#allocation9 + $0x50] sm:$0xff]
    %v444 = vld [vmem:[#allocation9 + $0x58] sm:$0xff]
    %v445 = vld [vmem:[#allocation9 + $0x60] sm:$0xff]
    %v446 = vld [vmem:[#allocation9 + $0x68] sm:$0xff]
    %v447 = vld [vmem:[#allocation9 + $0x70] sm:$0xff]
    %v448 = vld [vmem:[#allocation9 + $0x78] sm:$0xff]
    %v449 = vld [vmem:[#allocation9 + $0x80] sm:$0xff]
    %v450 = vld [vmem:[#allocation9 + $0x88] sm:$0xff]
    %v451 = vld [vmem:[#allocation9 + $0x90] sm:$0xff]
    %v452 = vld [vmem:[#allocation9 + $0x98] sm:$0xff]
    %v453 = vld [vmem:[#allocation9 + $0xa0] sm:$0xff]
    %v454 = vld [vmem:[#allocation9 + $0xa8] sm:$0xff]
    %v455 = vld [vmem:[#allocation9 + $0xb0] sm:$0xff]
    %v456 = vld [vmem:[#allocation9 + $0xb8] sm:$0xff]
    %v457 = vld [vmem:[#allocation9 + $0xc0] sm:$0xff]
    %v458 = vld [vmem:[#allocation9 + $0xc8] sm:$0xff]
    %v459 = vld [vmem:[#allocation9 + $0xd0] sm:$0xff]
    %v460 = vld [vmem:[#allocation9 + $0xd8] sm:$0xff]
    %v461 = vld [vmem:[#allocation9 + $0xe0] sm:$0xff]
    %v462 = vld [vmem:[#allocation9 + $0xe8] sm:$0xff]
    %v463 = vld [vmem:[#allocation9 + $0xf0] sm:$0xff]
    %v464 = vld [vmem:[#allocation9 + $0xf8] sm:$0xff]
    %v497 = vunpack.c.l.b16 %v433
    %v498 = vunpack.c.h.b16 %v433
    %v499 = vunpack.c.l.b16 %v434
    %v500 = vunpack.c.h.b16 %v434
    %v501 = vunpack.c.l.b16 %v435
    %v502 = vunpack.c.h.b16 %v435
    %v503 = vunpack.c.l.b16 %v436
    %v504 = vunpack.c.h.b16 %v436
    %v505 = vunpack.c.l.b16 %v437
    %v506 = vunpack.c.h.b16 %v437
    %v507 = vunpack.c.l.b16 %v438
    %v508 = vunpack.c.h.b16 %v438
    %v509 = vunpack.c.l.b16 %v439
    %v510 = vunpack.c.h.b16 %v439
    %v511 = vunpack.c.l.b16 %v440
    %v512 = vunpack.c.h.b16 %v440
    %v513 = vunpack.c.l.b16 %v441
    %v514 = vunpack.c.h.b16 %v441
    %v515 = vunpack.c.l.b16 %v442
    %v516 = vunpack.c.h.b16 %v442
    %v517 = vunpack.c.l.b16 %v443
    %v518 = vunpack.c.h.b16 %v443
    %v519 = vunpack.c.l.b16 %v444
    %v520 = vunpack.c.h.b16 %v444
    %v521 = vunpack.c.l.b16 %v445
    %v522 = vunpack.c.h.b16 %v445
    %v523 = vunpack.c.l.b16 %v446
    %v524 = vunpack.c.h.b16 %v446
    %v525 = vunpack.c.l.b16 %v447
    %v526 = vunpack.c.h.b16 %v447
    %v527 = vunpack.c.l.b16 %v448
    %v528 = vunpack.c.h.b16 %v448
    %v529 = vunpack.c.l.b16 %v449
    %v530 = vunpack.c.h.b16 %v449
    %v531 = vunpack.c.l.b16 %v450
    %v532 = vunpack.c.h.b16 %v450
    %v533 = vunpack.c.l.b16 %v451
    %v534 = vunpack.c.h.b16 %v451
    %v535 = vunpack.c.l.b16 %v452
    %v536 = vunpack.c.h.b16 %v452
    %v537 = vunpack.c.l.b16 %v453
    %v538 = vunpack.c.h.b16 %v453
    %v539 = vunpack.c.l.b16 %v454
    %v540 = vunpack.c.h.b16 %v454
    %v541 = vunpack.c.l.b16 %v455
    %v542 = vunpack.c.h.b16 %v455
    %v543 = vunpack.c.l.b16 %v456
    %v544 = vunpack.c.h.b16 %v456
    %v545 = vunpack.c.l.b16 %v457
    %v546 = vunpack.c.h.b16 %v457
    %v547 = vunpack.c.l.b16 %v458
    %v548 = vunpack.c.h.b16 %v458
    %v549 = vunpack.c.l.b16 %v459
    %v550 = vunpack.c.h.b16 %v459
    %v551 = vunpack.c.l.b16 %v460
    %v552 = vunpack.c.h.b16 %v460
    %v553 = vunpack.c.l.b16 %v461
    %v554 = vunpack.c.h.b16 %v461
    %v555 = vunpack.c.l.b16 %v462
    %v556 = vunpack.c.h.b16 %v462
    %v557 = vunpack.c.l.b16 %v463
    %v558 = vunpack.c.h.b16 %v463
    %v559 = vunpack.c.l.b16 %v464
    %v560 = vunpack.c.h.b16 %v464
    %v561 = vpack.c.b16 %v499, %v497
    %v562 = vpack.c.b16 %v500, %v498
    %v563 = vpack.c.b16 %v503, %v501
    %v564 = vpack.c.b16 %v504, %v502
    %v565 = vpack.c.b16 %v507, %v505
    %v566 = vpack.c.b16 %v508, %v506
    %v567 = vpack.c.b16 %v511, %v509
    %v568 = vpack.c.b16 %v512, %v510
    %v569 = vpack.c.b16 %v515, %v513
    %v570 = vpack.c.b16 %v516, %v514
    %v571 = vpack.c.b16 %v519, %v517
    %v572 = vpack.c.b16 %v520, %v518
    %v573 = vpack.c.b16 %v523, %v521
    %v574 = vpack.c.b16 %v524, %v522
    %v575 = vpack.c.b16 %v527, %v525
    %v576 = vpack.c.b16 %v528, %v526
    %v577 = vpack.c.b16 %v531, %v529
    %v578 = vpack.c.b16 %v532, %v530
    %v579 = vpack.c.b16 %v535, %v533
    %v580 = vpack.c.b16 %v536, %v534
    %v581 = vpack.c.b16 %v539, %v537
    %v582 = vpack.c.b16 %v540, %v538
    %v583 = vpack.c.b16 %v543, %v541
    %v584 = vpack.c.b16 %v544, %v542
    %v585 = vpack.c.b16 %v547, %v545
    %v586 = vpack.c.b16 %v548, %v546
    %v587 = vpack.c.b16 %v551, %v549
    %v588 = vpack.c.b16 %v552, %v550
    %v589 = vpack.c.b16 %v555, %v553
    %v590 = vpack.c.b16 %v556, %v554
    %v591 = vpack.c.b16 %v559, %v557
    %v592 = vpack.c.b16 %v560, %v558
    %625 = vmatprep.subr.bf16.mxu0 %v562
    %626 = vmatpush1.bf16.msra.mxu0 %v561
    %627 = vmatprep.subr.bf16.mxu0 %v564
    %628 = vmatpush1.bf16.msra.mxu0 %v563
    %629 = vmatprep.subr.bf16.mxu0 %v566
    %630 = vmatpush1.bf16.msra.mxu0 %v565
    %631 = vmatprep.subr.bf16.mxu0 %v568
    %632 = vmatpush1.bf16.msra.mxu0 %v567
    %633 = vmatprep.subr.bf16.mxu0 %v570
    %634 = vmatpush1.bf16.msra.mxu0 %v569
    %635 = vmatprep.subr.bf16.mxu0 %v572
    %636 = vmatpush1.bf16.msra.mxu0 %v571
    %637 = vmatprep.subr.bf16.mxu0 %v574
    %638 = vmatpush1.bf16.msra.mxu0 %v573
    %639 = vmatprep.subr.bf16.mxu0 %v576
    %640 = vmatpush1.bf16.msra.mxu0 %v575
    %641 = vmatprep.subr.bf16.mxu0 %v578
    %642 = vmatpush1.bf16.msra.mxu0 %v577
    %643 = vmatprep.subr.bf16.mxu0 %v580
    %644 = vmatpush1.bf16.msra.mxu0 %v579
    %645 = vmatprep.subr.bf16.mxu0 %v582
    %646 = vmatpush1.bf16.msra.mxu0 %v581
    %647 = vmatprep.subr.bf16.mxu0 %v584
    %648 = vmatpush1.bf16.msra.mxu0 %v583
    %649 = vmatprep.subr.bf16.mxu0 %v586
    %650 = vmatpush1.bf16.msra.mxu0 %v585
    %651 = vmatprep.subr.bf16.mxu0 %v588
    %652 = vmatpush1.bf16.msra.mxu0 %v587
    %653 = vmatprep.subr.bf16.mxu0 %v590
    %654 = vmatpush1.bf16.msra.mxu0 %v589
    %655 = vmatprep.subr.bf16.mxu0 %v592
    %656 = vmatpush1.bf16.msra.mxu0 %v591
    %657 = vmatprep.mubr.bf16.mxu0 %v432
    %658 = vmatmul.mubr.bf16.gmra.mrb[0].mxu0 %v431
    %v659 = vpop.f32.mrb[0].mxu0
    %v660 = vadd.f32 0.0, %v659
    %v661 = vpop.f32.mrb[0].mxu0
    %v662 = vadd.f32 0.0, %v661
    %v663 = vpop.f32.mrb[0].mxu0
    %v664 = vadd.f32 0.0, %v663
    %v665 = vpop.f32.mrb[0].mxu0
    %v666 = vadd.f32 0.0, %v665
    %667 = vdwg.mxu0
    %v668 = vadd.f32 %v427, %v660
    %v669 = vadd.f32 %v428, %v662
    %v670 = vadd.f32 %v429, %v664
    %v671 = vadd.f32 %v430, %v666
    %672 = vst [vmem:[#allocation3] sm:$0xff] %v668
    %673 = vst [vmem:[#allocation3 + $0x8] sm:$0xff] %v669
    %674 = vst [vmem:[#allocation3 + $0x10] sm:$0xff] %v670
    %675 = vst [vmem:[#allocation3 + $0x18] sm:$0xff] %v671
    // Predicated region
    $region46: #{tpu_custom_call.1} parent=1 // pred_check
      %p676 = pneg %p68
    $region47: #{tpu_custom_call.1} parent=1 // pred_check_branch
      %678 = sbr.rel (%p676) target = $region49
    $region48: #{tpu_custom_call.1} parent=1 // pred_region
      %v679 = vld [vmem:[#allocation3] sm:$0xff]
      %v680 = vld [vmem:[#allocation3 + $0x8] sm:$0xff]
      %v681 = vld [vmem:[#allocation3 + $0x10] sm:$0xff]
      %v682 = vld [vmem:[#allocation3 + $0x18] sm:$0xff]
      %v683 = vld [vmem:[%s6] sm:$0x3]
      %v685 = vlaneseq
      %v686 = vshrl.u32 %v685, 7
      %v687 = vsub.s32 0, %v686
      %v688 = vrot.slane %v683, %v687
      %v689 = vlaneseq
      %v690 = vshrl.u32 %v689, 7
      %v691 = vsub.s32 1, %v690
      %v692 = vrot.slane %v683, %v691
      %v695 = vadd.f32 %v679, %v688
      %v696 = vadd.f32 %v680, %v692
      %v697 = vadd.f32 %v681, %v688
      %v698 = vadd.f32 %v682, %v692
      %699 = vst [vmem:[#allocation10] sm:$0xff] %v695
      %700 = vst [vmem:[#allocation10 + $0x8] sm:$0xff] %v696
      %701 = vst [vmem:[#allocation10 + $0x10] sm:$0xff] %v697
      %702 = vst [vmem:[#allocation10 + $0x18] sm:$0xff] %v698
    $region49: #{tpu_custom_call.1} parent=1 // pred_fallthru
      _
    // Predicated region
    $region50: #{tpu_custom_call.1} parent=1 // pred_check
      _
    $region51: #{tpu_custom_call.1} parent=1 // pred_check_branch
      %704 = sbr.rel (0) target = $region53
    $region52: #{tpu_custom_call.1} parent=1 // pred_region
      %s706 = ssub.s32 512, 512
      %707 = vsyncadd [#allocation6], %s706
      %s708 = sshll.u32 [#allocation10], 4
      %s709 = int_to_ptr.vmem [resolvable:$true] %s708
      %714 = dma.vmem_to_hbm [thread:$0]  %s709, 512, %s7, [#allocation6], 256, 256, 16
    $region53: #{tpu_custom_call.1} parent=1 // pred_fallthru
      _
    // Predicated region
    $region54: #{tpu_custom_call.1} parent=1 // pred_check
      _
    $region55: #{tpu_custom_call.1} parent=1 // pred_check_branch
      %716 = sbr.rel (0) target = $region57
    $region56: #{tpu_custom_call.1} parent=1 // pred_region
      %717 = dma.done [#allocation6], 512
    $region57: #{tpu_custom_call.1} parent=1 // pred_fallthru
      _
    %718 = vsyncpa [#allocation5], 1
    %719 = vsyncpa [#allocation8], 1
    %720 = vsyncpa [#allocation6], 1

</llo_original>
